<compile_context>
chip_gen: v7x
topology: tpu7x:2x2x1
jax: 0.10.0
libtpu: 0.0.40
codegen_flags: <defaults>
</compile_context>

<pallas_src>
import math

import jax
import jax.numpy as jnp
from jax.experimental import pallas as pl
from jax.experimental.pallas import tpu as pltpu

_LANE = 128
_SUB = 8
_TARGET_ROWS = 8192  # 8192 x 128 x 4B = 4 MiB per f32 block (2 MiB for bf16)


def _round_up(n, m):
    return ((n + m - 1) // m) * m


def _plan_tiles(total):
    """Pick (padded_total, tile_rows, num_blocks) for the (R, 128) slab."""
    chunk = _SUB * _LANE  # 1024: keeps R a multiple of 8 (dense vregs)
    padded = _round_up(total, chunk)
    rows = padded // _LANE
    if rows <= _TARGET_ROWS:
        # Small input: single full-extent block, no pipeline machinery needed.
        return padded, rows, 1
    # Largest multiple-of-8 divisor of `rows` that is <= _TARGET_ROWS.
    m = rows // _SUB
    best = 1
    for d in range(min(m, _TARGET_ROWS // _SUB), 0, -1):
        if m % d == 0:
            best = d
            break
    tile_r = _SUB * best
    if tile_r >= 512:
        return padded, tile_r, rows // tile_r
    # Awkward factorization: pad further so full-size blocks divide evenly.
    padded = _round_up(total, _TARGET_ROWS * _LANE)
    return padded, _TARGET_ROWS, padded // (_TARGET_ROWS * _LANE)


def _sumsq_kernel(x_ref, acc_ref):
    """Accumulate per-chunk sum-of-squares into a resident (8,128) output block."""
    k = pl.program_id(1)  # reduction axis (innermost, "arbitrary")

    @pl.when(k == 0)
    def _():
        acc_ref[...] = jnp.zeros_like(acc_ref)

    x = x_ref[...].astype(jnp.float32)
    sq = x * x
    # Fold (tile_r, 128) down to one (8, 128) vreg: each (8,128) slab is a
    # native vreg, so sum(axis=0) is pure elementwise VPU adds (no XLU tree).
    acc_ref[...] += jnp.sum(sq.reshape(-1, _SUB, _LANE), axis=0)


def negative_gaussian_loss(x, size):
    """x: (B, *size) array. Returns scalar f32 matching the module's forward()."""
    dim = int(math.prod(size))
    batch = x.shape[0]
    total = batch * dim
    bias = 0.5 * total * math.log(2.0 * math.pi)

    flat = x.reshape(-1)  # same element set/order as torch .view(-1, dim)
    padded, tile_r, num_blocks = _plan_tiles(total)
    if padded != total:
        # Zero padding is exact: zeros contribute nothing to sum(x^2).
        flat = jnp.pad(flat, (0, padded - total))
    x2d = flat.reshape(padded // _LANE, _LANE)  # lane/sublane-dense slab

    # Leading parallel axis: lets v7x use both TensorCores; cheap elsewhere.
    p = 2 if (num_blocks >= 2 and num_blocks % 2 == 0) else 1
    k_steps = num_blocks // p

    partials = pl.pallas_call(
        _sumsq_kernel,
        out_shape=jax.ShapeDtypeStruct((p * _SUB, _LANE), jnp.float32),
        grid_spec=pltpu.PrefetchScalarGridSpec(
            num_scalar_prefetch=0,
            grid=(p, k_steps),
            in_specs=[
                pl.BlockSpec(
                    (tile_r, _LANE),
                    lambda pi, ki: (pi * k_steps + ki, 0),
                )
            ],
            out_specs=pl.BlockSpec((_SUB, _LANE), lambda pi, ki: (pi, 0)),
        ),
        compiler_params=pltpu.CompilerParams(
            dimension_semantics=("parallel", "arbitrary"),
            # 2x double-buffered 4 MiB input blocks + tiny accumulators;
            # 32 MiB scoped VMEM is safe on v5e/v6e/v7x.
            vmem_limit_bytes=32 * 1024 * 1024,
        ),
    )(x2d)

    # One cheap final reduction over 1-2 KiB of partial sums.
    return 0.5 * jnp.sum(partials) + bias


def negative_gaussian_loss_ref(x, size):
    dim = int(math.prod(size))
    x2d = x.reshape(-1, dim).astype(jnp.float32)
    logp = -0.5 * jnp.sum(x2d * x2d, axis=-1) - 0.5 * dim * math.log(2.0 * math.pi)
    return -jnp.sum(logp, axis=-1)


# TODO(synk): sample() (drawing from the MVN) is not implemented; only the
# forward()/NLL path of the module is translated.

if __name__ == "__main__":
    # Module configured with size=(C, H, W); forward receives NCHW input.
    size = (4, 16, 16)  # dim = 1024
    batch = 2
    key = jax.random.PRNGKey(0)
    x = jax.random.normal(key, (batch, *size), dtype=jnp.float32)

    out = negative_gaussian_loss(x, size)
    out = jax.block_until_ready(out)

    ref = negative_gaussian_loss_ref(x, size)
    assert out.shape == ()
    assert jnp.allclose(out, ref, rtol=1e-5, atol=1e-3), (out, ref)

    # Also exercise the multi-block / parallel-axis path (and bf16 input).
    x_big = jax.random.normal(key, (8, 4, 64, 1024), dtype=jnp.bfloat16)
    out_big = jax.block_until_ready(negative_gaussian_loss(x_big, (4, 64, 1024)))
    ref_big = negative_gaussian_loss_ref(x_big.astype(jnp.float32), (4, 64, 1024))
    assert jnp.allclose(out_big, ref_big, rtol=1e-3, atol=1.0), (out_big, ref_big)

    print("KERNEL_OK")
</pallas_src>

<mosaic_0001>
module attributes {stable_mosaic.version = 11 : i64} {
  func.func @_sumsq_kernel(%arg0: i32, %arg1: i32, %arg2: memref<16x128xf32, #tpu.memory_space<vmem>>, %arg3: memref<8x128xf32, #tpu.memory_space<vmem>>) attributes {dimension_semantics = [#tpu.dimension_semantics<parallel>, #tpu.dimension_semantics<arbitrary>], iteration_bounds = array<i64: 1, 1>, scalar_prefetch = 0 : i64, scratch_operands = 0 : i64, tpu.core_type = #tpu.core_type<tc>, window_params = [{transform_indices = @transform_0, window_bounds = array<i64: 16, 128>}, {transform_indices = @transform_1, window_bounds = array<i64: 8, 128>}]} {
    %c0_i32 = arith.constant 0 : i32
    %0 = arith.cmpi eq, %arg1, %c0_i32 : i32
    %1 = arith.extui %0 : i1 to i32
    %c0_i32_0 = arith.constant 0 : i32
    %2 = arith.cmpi ne, %1, %c0_i32_0 : i32
    scf.if %2 {
      %cst_6 = arith.constant 0.000000e+00 : f32
      %10 = vector.broadcast %cst_6 : f32 to vector<8x128xf32>
      %c0_7 = arith.constant 0 : index
      %c0_8 = arith.constant 0 : index
      %11 = vector.load %arg3[%c0_7, %c0_8] : memref<8x128xf32, #tpu.memory_space<vmem>>, vector<8x128xf32>
      tpu.vector_store %arg3[%c0_7, %c0_8], %10 {strides = array<i32>} : memref<8x128xf32, #tpu.memory_space<vmem>>, vector<8x128xf32>,
    } else {
    }
    %c0 = arith.constant 0 : index
    %c0_1 = arith.constant 0 : index
    %3 = vector.load %arg2[%c0, %c0_1] : memref<16x128xf32, #tpu.memory_space<vmem>>, vector<16x128xf32>
    %4 = arith.mulf %3, %3 : vector<16x128xf32>
    %c0_2 = arith.constant 0 : index
    %c0_3 = arith.constant 0 : index
    %5 = vector.load %arg3[%c0_2, %c0_3] : memref<8x128xf32, #tpu.memory_space<vmem>>, vector<8x128xf32>
    %6 = vector.shape_cast %4 : vector<16x128xf32> to vector<2x8x128xf32>
    %cst = arith.constant dense<0.000000e+00> : vector<8x128xf32>
    %7 = vector.multi_reduction <add>, %6, %cst [0] : vector<2x8x128xf32> to vector<8x128xf32>
    %8 = arith.addf %5, %7 : vector<8x128xf32>
    %c0_4 = arith.constant 0 : index
    %c0_5 = arith.constant 0 : index
    %9 = vector.load %arg3[%c0_4, %c0_5] : memref<8x128xf32, #tpu.memory_space<vmem>>, vector<8x128xf32>
    tpu.vector_store %arg3[%c0_4, %c0_5], %8 {strides = array<i32>} : memref<8x128xf32, #tpu.memory_space<vmem>>, vector<8x128xf32>,
    return
  }
  func.func @transform_0(%arg0: i32, %arg1: i32) -> (i32, i32) {
    %c1_i32 = arith.constant 1 : i32
    %0 = arith.muli %arg0, %c1_i32 : i32
    %1 = arith.addi %0, %arg1 : i32
    %c0_i32 = arith.constant 0 : i32
    %c0_i32_0 = arith.constant 0 : i32
    return %1, %c0_i32 : i32, i32
  }
  func.func @transform_1(%arg0: i32, %arg1: i32) -> (i32, i32) {
    %c0_i32 = arith.constant 0 : i32
    %c0_i32_0 = arith.constant 0 : i32
    return %arg0, %c0_i32 : i32, i32
  }
}

</mosaic_0001>

<llo_original>
// kernel: tpu_custom_call.1
$region0: #{tpu_custom_call.1}
  #allocation0 [shape = 'u32[]', space=smem, size = 0x4, offset = 0x4, fixed_abs, tag = 'smem constant byte address 0x4 - core index']
  #allocation1 [shape = 'u32[144,128]{1,0:T(1,128)}', space=vmem, size = 0x12000, scoped, tag = 'internal scratch']
  %s0 = inlined_call_operand.hbm [shape: f32[16,128], index: 0, kind: input, shape index: {}]
  %s1 = inlined_call_operand.hbm [shape: f32[8,128], index: 1, kind: output, shape index: {}]
  %s2 = sld [smem:[#allocation0]]
  $region22: #{tpu_custom_call.1} parent=0
    _
  %s4 = ssub.s32 1, %s2
  %s5 = scalar_select 0, %s4, %s2
  $region1: #{tpu_custom_call.1} parent=0
    #allocation2 [shape = 'u8[8192]{0}', space=vmem, size = 0x2000, scoped, tag = 'input window, operand 0, single buffered']
    #allocation3 [shape = 's32[1]{0}', space=sflag, size = 0x4, scoped, tag = 'scoped memory for tpu_custom_call.1']
    #allocation4 [shape = 's32[1]{0}', space=sflag, size = 0x4, scoped, tag = 'scoped memory for tpu_custom_call.1']
    #allocation5 [shape = 'u8[4096]{0}', space=vmem, size = 0x1000, scoped, tag = 'output window, operand 0, single buffered']
    %6 = vsyncpa [#allocation3], 0
    %7 = vsyncpa [#allocation4], 0
    // Predicated region
    $region2: #{tpu_custom_call.1} parent=1 // pred_check
      _
    $region3: #{tpu_custom_call.1} parent=1 // pred_check_branch
      %9 = sbr.rel (0) target = $region5
    $region4: #{tpu_custom_call.1} parent=1 // pred_region
      %s10 = sadd.s32 0, 0
      %s11 = smul.u32 2, %s10
      %s13 = ssub.s32 256, 256
      %14 = vsyncadd [#allocation3], %s13
      %s15 = smul.addr %s11, 128
      %s16 = scalar_lea.hbm %s0, %s15
      %s17 = sshll.u32 [#allocation2], 4
      %s18 = int_to_ptr.vmem [resolvable:$true] %s17
      %23 = dma.hbm_to_vmem [thread:$0]  %s16, 256, %s18, [#allocation3], 128, 128, 8
    $region5: #{tpu_custom_call.1} parent=1 // pred_fallthru
      _
    // Predicated region
    $region6: #{tpu_custom_call.1} parent=1 // pred_check
      _
    $region7: #{tpu_custom_call.1} parent=1 // pred_check_branch
      %25 = sbr.rel (0) target = $region9
    $region8: #{tpu_custom_call.1} parent=1 // pred_region
      %26 = dma.done [#allocation3], 256
    $region9: #{tpu_custom_call.1} parent=1 // pred_fallthru
      _
    %s27 = sadd.s32 0, 0
    %s28 = smul.u32 2, %s27
    %p29 = scmp.eq.s32.totalorder 0, 0
    // Predicated region
    $region10: #{tpu_custom_call.1} parent=1 // pred_check
      %p30 = pneg %p29
    $region11: #{tpu_custom_call.1} parent=1 // pred_check_branch
      %32 = sbr.rel (%p30) target = $region13
    $region12: #{tpu_custom_call.1} parent=1 // pred_region
      %33 = vst [vmem:[#allocation5] sm:$0xff] 0.0
    $region13: #{tpu_custom_call.1} parent=1 // pred_fallthru
      _
    %v34 = vld [vmem:[#allocation2] sm:$0xff]
    %v35 = vld [vmem:[#allocation2 + $0x8] sm:$0xff]
    %v36 = vmul.f32 %v34, %v34
    %v37 = vmul.f32 %v35, %v35
    %v38 = vld [vmem:[#allocation5] sm:$0xff]
    %v39 = vadd.f32 %v36, %v37
    %v40 = vadd.f32 %v38, %v39
    %41 = vst [vmem:[#allocation5] sm:$0xff] %v40
    // Predicated region
    $region14: #{tpu_custom_call.1} parent=1 // pred_check
      _
    $region15: #{tpu_custom_call.1} parent=1 // pred_check_branch
      %43 = sbr.rel (0) target = $region17
    $region16: #{tpu_custom_call.1} parent=1 // pred_region
      %s45 = ssub.s32 128, 128
      %46 = vsyncadd [#allocation4], %s45
      %s48 = sshll.u32 [#allocation5], 4
      %s49 = int_to_ptr.vmem [resolvable:$true] %s48
      %51 = dma.vmem_to_hbm [thread:$0]  %s49, 128, %s1, [#allocation4]
    $region17: #{tpu_custom_call.1} parent=1 // pred_fallthru
      _
    // Predicated region
    $region18: #{tpu_custom_call.1} parent=1 // pred_check
      _
    $region19: #{tpu_custom_call.1} parent=1 // pred_check_branch
      %53 = sbr.rel (0) target = $region21
    $region20: #{tpu_custom_call.1} parent=1 // pred_region
      %54 = dma.done [#allocation4], 128
    $region21: #{tpu_custom_call.1} parent=1 // pred_fallthru
      _
    %55 = vsyncpa [#allocation3], 1
    %56 = vsyncpa [#allocation4], 1

</llo_original>
